<compile_context>
chip_gen: v7x
topology: tpu7x:2x2x1
jax: 0.10.0
libtpu: 0.0.40
codegen_flags: <defaults>
</compile_context>

<pallas_src>
import jax
import jax.numpy as jnp
from jax.experimental import pallas as pl
from jax.experimental.pallas import tpu as pltpu

_LANE = 128


def _round_up(n, m):
    return ((n + m - 1) // m) * m


# ----------------------------- kernel -------------------------------------- #

def _fused_kernel(x_ref, wb_ref, bb_ref, wh_ref, bh_ref, f_ref, o_ref):
    # backbone: features = relu(x @ Wb + bb); bf16 operands, f32 accumulate.
    feat = jnp.dot(x_ref[...], wb_ref[...], preferred_element_type=jnp.float32)
    feat = jnp.maximum(feat + bb_ref[...], 0.0)
    f_ref[...] = feat.astype(f_ref.dtype)
    # all cluster heads in ONE matmul: logits = feat @ Wh_flat + bh_flat
    logits = jnp.dot(feat.astype(wh_ref.dtype), wh_ref[...],
                     preferred_element_type=jnp.float32)
    o_ref[...] = (logits + bh_ref[...]).astype(o_ref.dtype)


# ----------------------------- wrappers ------------------------------------ #

def prepare_params(params):
    """One-time prep: flatten the per-head weights into a single matmul
    operand, zero-pad lane dims to multiples of 128, cast matmul operands to
    bf16 (biases stay f32)."""
    w_b = params["w_backbone"]            # [D_in, F]
    b_b = params["b_backbone"]            # [1, F]
    w_h = params["w_heads"]               # [H, F, K]
    b_h = params["b_heads"]               # [H, 1, K]
    D_in, F = w_b.shape
    H, _, K = w_h.shape
    F_pad = _round_up(F, _LANE)
    HK = H * K
    HK_pad = _round_up(HK, _LANE)

    w_b_p = jnp.zeros((D_in, F_pad), jnp.bfloat16).at[:, :F].set(
        w_b.astype(jnp.bfloat16))
    b_b_p = jnp.zeros((1, F_pad), jnp.float32).at[:, :F].set(b_b)

    # [H, F, K] -> [F, H*K]  (column h*K + k == head h, cluster k)
    w_h_flat = jnp.transpose(w_h, (1, 0, 2)).reshape(F, HK)
    w_h_p = jnp.zeros((F_pad, HK_pad), jnp.bfloat16).at[:F, :HK].set(
        w_h_flat.astype(jnp.bfloat16))
    b_h_p = jnp.zeros((1, HK_pad), jnp.float32).at[:, :HK].set(
        b_h.reshape(1, HK))

    dims = {"F": F, "H": H, "K": K, "F_pad": F_pad, "HK_pad": HK_pad}
    return (w_b_p, b_b_p, w_h_p, b_h_p), dims


def clustering_model_forward(x_nchw, prepped, dims):
    """Matches ClusteringModel.forward: returns (features [B,F],
    logits stacked as [H, B, K]; logits[h] == cluster_heads[h](features))."""
    w_b_p, b_b_p, w_h_p, b_h_p = prepped
    B = x_nchw.shape[0]
    x_flat = x_nchw.reshape(B, -1).astype(jnp.bfloat16)   # glue reshape + cast
    D_in = x_flat.shape[1]
    F_pad, HK_pad = dims["F_pad"], dims["HK_pad"]

    feat_pad, logits_pad = pl.pallas_call(
        _fused_kernel,
        out_shape=(jax.ShapeDtypeStruct((B, F_pad), jnp.float32),
                   jax.ShapeDtypeStruct((B, HK_pad), jnp.float32)),
        grid_spec=pltpu.PrefetchScalarGridSpec(
            num_scalar_prefetch=0,
            grid=(1,),
            in_specs=[
                pl.BlockSpec((B, D_in), lambda i: (0, 0)),
                pl.BlockSpec((D_in, F_pad), lambda i: (0, 0)),
                pl.BlockSpec((1, F_pad), lambda i: (0, 0)),
                pl.BlockSpec((F_pad, HK_pad), lambda i: (0, 0)),
                pl.BlockSpec((1, HK_pad), lambda i: (0, 0)),
            ],
            out_specs=[pl.BlockSpec((B, F_pad), lambda i: (0, 0)),
                       pl.BlockSpec((B, HK_pad), lambda i: (0, 0))],
        ),
        compiler_params=pltpu.CompilerParams(
            dimension_semantics=("arbitrary",)),
    )(x_flat, w_b_p, b_b_p, w_h_p, b_h_p)

    F, H, K = dims["F"], dims["H"], dims["K"]
    features = feat_pad[:, :F]
    logits_stacked = logits_pad[:, :H * K].reshape(B, H, K).transpose(1, 0, 2)
    return features, logits_stacked


# ----------------------------- main ----------------------------------------- #

if __name__ == "__main__":
    # small shapes consistent with the module
    B, C, Himg, Wimg = 2, 4, 16, 16
    feature_dim = 32
    num_clusters = 10
    num_cluster_heads = 3
    D_in = C * Himg * Wimg

    key = jax.random.PRNGKey(0)
    kx, kwb, kbb, kwh, kbh = jax.random.split(key, 5)

    x = jax.random.normal(kx, (B, C, Himg, Wimg), dtype=jnp.float32)

    # deterministic parameter init (Linear-style scaling)
    params = {
        "w_backbone": jax.random.normal(kwb, (D_in, feature_dim),
                                        dtype=jnp.float32) / jnp.sqrt(D_in),
        "b_backbone": jax.random.normal(kbb, (1, feature_dim),
                                        dtype=jnp.float32) * 0.01,
        "w_heads": jax.random.normal(
            kwh, (num_cluster_heads, feature_dim, num_clusters),
            dtype=jnp.float32) / jnp.sqrt(feature_dim),
        "b_heads": jax.random.normal(
            kbh, (num_cluster_heads, 1, num_clusters),
            dtype=jnp.float32) * 0.01,
    }

    prepped, dims = prepare_params(params)
    features, logits = clustering_model_forward(x, prepped, dims)
    features = jax.block_until_ready(features)
    logits = jax.block_until_ready(logits)

    # reference in plain JAX, replicating the bf16 operand casts of the kernel
    x_flat = x.reshape(B, -1)
    feat_ref = jnp.maximum(
        jnp.dot(x_flat.astype(jnp.bfloat16),
                params["w_backbone"].astype(jnp.bfloat16),
                preferred_element_type=jnp.float32) + params["b_backbone"],
        0.0)
    assert features.shape == (B, feature_dim)
    assert jnp.allclose(features, feat_ref, atol=5e-3), "feature mismatch"
    for h in range(num_cluster_heads):
        log_ref = jnp.dot(feat_ref.astype(jnp.bfloat16),
                          params["w_heads"][h].astype(jnp.bfloat16),
                          preferred_element_type=jnp.float32) + params["b_heads"][h]
        assert logits[h].shape == (B, num_clusters)
        assert jnp.allclose(logits[h], log_ref, atol=5e-3), f"head {h} mismatch"

    print("KERNEL_OK")
</pallas_src>

<mosaic_0001>
module attributes {stable_mosaic.version = 11 : i64} {
  func.func @_fused_kernel(%arg0: i32, %arg1: memref<2x1024xbf16, #tpu.memory_space<vmem>>, %arg2: memref<1024x128xbf16, #tpu.memory_space<vmem>>, %arg3: memref<1x128xf32, #tpu.memory_space<vmem>>, %arg4: memref<128x128xbf16, #tpu.memory_space<vmem>>, %arg5: memref<1x128xf32, #tpu.memory_space<vmem>>, %arg6: memref<2x128xf32, #tpu.memory_space<vmem>>, %arg7: memref<2x128xf32, #tpu.memory_space<vmem>>) attributes {dimension_semantics = [#tpu.dimension_semantics<arbitrary>], iteration_bounds = array<i64: 1>, scalar_prefetch = 0 : i64, scratch_operands = 0 : i64, tpu.core_type = #tpu.core_type<tc>, window_params = [{pipeline_mode = #tpu.pipeline_mode<synchronous>, transform_indices = @transform_0, window_bounds = array<i64: 2, 1024>}, {pipeline_mode = #tpu.pipeline_mode<synchronous>, transform_indices = @transform_1, window_bounds = array<i64: 1024, 128>}, {pipeline_mode = #tpu.pipeline_mode<synchronous>, transform_indices = @transform_2, window_bounds = array<i64: 1, 128>}, {pipeline_mode = #tpu.pipeline_mode<synchronous>, transform_indices = @transform_3, window_bounds = array<i64: 128, 128>}, {pipeline_mode = #tpu.pipeline_mode<synchronous>, transform_indices = @transform_4, window_bounds = array<i64: 1, 128>}, {pipeline_mode = #tpu.pipeline_mode<synchronous>, transform_indices = @transform_5, window_bounds = array<i64: 2, 128>}, {pipeline_mode = #tpu.pipeline_mode<synchronous>, transform_indices = @transform_6, window_bounds = array<i64: 2, 128>}]} {
    %c0 = arith.constant 0 : index
    %c0_0 = arith.constant 0 : index
    %0 = vector.load %arg1[%c0, %c0_0] : memref<2x1024xbf16, #tpu.memory_space<vmem>>, vector<2x1024xbf16>
    %c0_1 = arith.constant 0 : index
    %c0_2 = arith.constant 0 : index
    %1 = vector.load %arg2[%c0_1, %c0_2] : memref<1024x128xbf16, #tpu.memory_space<vmem>>, vector<1024x128xbf16>
    %cst = arith.constant dense<0.000000e+00> : vector<2x128xf32>
    %2 = tpu.matmul %0, %1, %cst {dimension_numbers = #tpu.dot_dimension_numbers<[1], [0], [0], [1], [0, 0, 1, 1], [], []>} : vector<2x1024xbf16>, vector<1024x128xbf16>, vector<2x128xf32> -> vector<2x128xf32>
    %c0_3 = arith.constant 0 : index
    %c0_4 = arith.constant 0 : index
    %3 = vector.load %arg3[%c0_3, %c0_4] : memref<1x128xf32, #tpu.memory_space<vmem>>, vector<1x128xf32>
    %4 = vector.broadcast %3 : vector<1x128xf32> to vector<2x128xf32>
    %5 = arith.addf %2, %4 : vector<2x128xf32>
    %cst_5 = arith.constant 0.000000e+00 : f32
    %6 = vector.broadcast %cst_5 : f32 to vector<2x128xf32>
    %7 = arith.maximumf %5, %6 : vector<2x128xf32>
    %c0_6 = arith.constant 0 : index
    %c0_7 = arith.constant 0 : index
    %8 = vector.load %arg6[%c0_6, %c0_7] : memref<2x128xf32, #tpu.memory_space<vmem>>, vector<2x128xf32>
    tpu.vector_store %arg6[%c0_6, %c0_7], %7 {strides = array<i32>} : memref<2x128xf32, #tpu.memory_space<vmem>>, vector<2x128xf32>,
    %9 = arith.truncf %7 : vector<2x128xf32> to vector<2x128xbf16>
    %c0_8 = arith.constant 0 : index
    %c0_9 = arith.constant 0 : index
    %10 = vector.load %arg4[%c0_8, %c0_9] : memref<128x128xbf16, #tpu.memory_space<vmem>>, vector<128x128xbf16>
    %cst_10 = arith.constant dense<0.000000e+00> : vector<2x128xf32>
    %11 = tpu.matmul %9, %10, %cst_10 {dimension_numbers = #tpu.dot_dimension_numbers<[1], [0], [0], [1], [0, 0, 1, 1], [], []>} : vector<2x128xbf16>, vector<128x128xbf16>, vector<2x128xf32> -> vector<2x128xf32>
    %c0_11 = arith.constant 0 : index
    %c0_12 = arith.constant 0 : index
    %12 = vector.load %arg5[%c0_11, %c0_12] : memref<1x128xf32, #tpu.memory_space<vmem>>, vector<1x128xf32>
    %13 = vector.broadcast %12 : vector<1x128xf32> to vector<2x128xf32>
    %14 = arith.addf %11, %13 : vector<2x128xf32>
    %c0_13 = arith.constant 0 : index
    %c0_14 = arith.constant 0 : index
    %15 = vector.load %arg7[%c0_13, %c0_14] : memref<2x128xf32, #tpu.memory_space<vmem>>, vector<2x128xf32>
    tpu.vector_store %arg7[%c0_13, %c0_14], %14 {strides = array<i32>} : memref<2x128xf32, #tpu.memory_space<vmem>>, vector<2x128xf32>,
    return
  }
  func.func @transform_0(%arg0: i32) -> (i32, i32) {
    %c0_i32 = arith.constant 0 : i32
    %c0_i32_0 = arith.constant 0 : i32
    %c0_i32_1 = arith.constant 0 : i32
    return %c0_i32, %c0_i32_0 : i32, i32
  }
  func.func @transform_1(%arg0: i32) -> (i32, i32) {
    %c0_i32 = arith.constant 0 : i32
    %c0_i32_0 = arith.constant 0 : i32
    %c0_i32_1 = arith.constant 0 : i32
    return %c0_i32, %c0_i32_0 : i32, i32
  }
  func.func @transform_2(%arg0: i32) -> (i32, i32) {
    %c0_i32 = arith.constant 0 : i32
    %c0_i32_0 = arith.constant 0 : i32
    %c0_i32_1 = arith.constant 0 : i32
    return %c0_i32, %c0_i32_0 : i32, i32
  }
  func.func @transform_3(%arg0: i32) -> (i32, i32) {
    %c0_i32 = arith.constant 0 : i32
    %c0_i32_0 = arith.constant 0 : i32
    %c0_i32_1 = arith.constant 0 : i32
    return %c0_i32, %c0_i32_0 : i32, i32
  }
  func.func @transform_4(%arg0: i32) -> (i32, i32) {
    %c0_i32 = arith.constant 0 : i32
    %c0_i32_0 = arith.constant 0 : i32
    %c0_i32_1 = arith.constant 0 : i32
    return %c0_i32, %c0_i32_0 : i32, i32
  }
  func.func @transform_5(%arg0: i32) -> (i32, i32) {
    %c0_i32 = arith.constant 0 : i32
    %c0_i32_0 = arith.constant 0 : i32
    %c0_i32_1 = arith.constant 0 : i32
    return %c0_i32, %c0_i32_0 : i32, i32
  }
  func.func @transform_6(%arg0: i32) -> (i32, i32) {
    %c0_i32 = arith.constant 0 : i32
    %c0_i32_0 = arith.constant 0 : i32
    %c0_i32_1 = arith.constant 0 : i32
    return %c0_i32, %c0_i32_0 : i32, i32
  }
}

</mosaic_0001>

<llo_original>
// kernel: tpu_custom_call.1
$region0: #{tpu_custom_call.1}
  #allocation0 [shape = 'u32[]', space=smem, size = 0x4, offset = 0x4, fixed_abs, tag = 'smem constant byte address 0x4 - core index']
  #allocation1 [shape = 'u32[144,128]{1,0:T(1,128)}', space=vmem, size = 0x12000, scoped, tag = 'internal scratch']
  %s0 = inlined_call_operand.hbm [shape: bf16[2,1024], index: 0, kind: input, shape index: {}]
  %s1 = inlined_call_operand.hbm [shape: bf16[1024,128], index: 1, kind: input, shape index: {}]
  %s2 = inlined_call_operand.vmem [shape: f32[1,128], index: 2, kind: input, shape index: {}]
  %s3 = inlined_call_operand.hbm [shape: bf16[128,128], index: 3, kind: input, shape index: {}]
  %s4 = inlined_call_operand.vmem [shape: f32[1,128], index: 4, kind: input, shape index: {}]
  %s5 = inlined_call_operand.hbm [shape: f32[2,128], index: 5, kind: output, shape index: {0}]
  %s6 = inlined_call_operand.hbm [shape: f32[2,128], index: 6, kind: output, shape index: {1}]
  %7 = xla_tuple %s5, %s6
  %s8 = sld [smem:[#allocation0]]
  $region50: #{tpu_custom_call.1} parent=0
    _
  %s10 = ssub.s32 1, %s8
  %s11 = scalar_select 0, %s10, %s8
  $region1: #{tpu_custom_call.1} parent=0
    #allocation2 [shape = 'u8[4096]{0}', space=vmem, size = 0x1000, scoped, tag = 'input window, operand 0, single buffered']
    #allocation3 [shape = 's32[1]{0}', space=sflag, size = 0x4, scoped, tag = 'scoped memory for tpu_custom_call.1']
    #allocation4 [shape = 's32[1]{0}', space=sflag, size = 0x4, scoped, tag = 'scoped memory for tpu_custom_call.1']
    #allocation5 [shape = 'u8[262144]{0}', space=vmem, size = 0x40000, scoped, tag = 'input window, operand 1, single buffered']
    #allocation6 [shape = 's32[1]{0}', space=sflag, size = 0x4, scoped, tag = 'scoped memory for tpu_custom_call.1']
    #allocation7 [shape = 'u8[32768]{0}', space=vmem, size = 0x8000, scoped, tag = 'input window, operand 3, single buffered']
    #allocation8 [shape = 'u8[1024]{0}', space=vmem, size = 0x400, scoped, tag = 'output window, operand 0, single buffered']
    #allocation9 [shape = 'u8[1024]{0}', space=vmem, size = 0x400, scoped, tag = 'output window, operand 1, single buffered']
    #allocation10 [shape = 's32[1]{0}', space=sflag, size = 0x4, scoped, tag = 'scoped memory for tpu_custom_call.1']
    %12 = vsyncpa [#allocation3], 0
    %13 = vsyncpa [#allocation6], 0
    %14 = vsyncpa [#allocation4], 0
    %15 = vsyncpa [#allocation10], 0
    // Predicated region
    $region2: #{tpu_custom_call.1} parent=1 // pred_check
      _
    $region3: #{tpu_custom_call.1} parent=1 // pred_check_branch
      %17 = sbr.rel (0) target = $region5
    $region4: #{tpu_custom_call.1} parent=1 // pred_region
      %s19 = ssub.s32 128, 128
      %20 = vsyncadd [#allocation3], %s19
      %s22 = sshll.u32 [#allocation2], 4
      %s23 = int_to_ptr.vmem [resolvable:$true] %s22
      %25 = dma.hbm_to_vmem [thread:$0]  %s0, 128, %s23, [#allocation3]
    $region5: #{tpu_custom_call.1} parent=1 // pred_fallthru
      _
    // Predicated region
    $region6: #{tpu_custom_call.1} parent=1 // pred_check
      _
    $region7: #{tpu_custom_call.1} parent=1 // pred_check_branch
      %27 = sbr.rel (0) target = $region9
    $region8: #{tpu_custom_call.1} parent=1 // pred_region
      %s29 = ssub.s32 8192, 8192
      %30 = vsyncadd [#allocation6], %s29
      %s31 = sshll.u32 [#allocation5], 4
      %s32 = int_to_ptr.vmem [resolvable:$true] %s31
      %37 = dma.hbm_to_vmem [thread:$0]  %s1, 8192, %s32, [#allocation6], 64, 64, 4
    $region9: #{tpu_custom_call.1} parent=1 // pred_fallthru
      _
    // Predicated region
    $region10: #{tpu_custom_call.1} parent=1 // pred_check
      _
    $region11: #{tpu_custom_call.1} parent=1 // pred_check_branch
      %39 = sbr.rel (0) target = $region13
    $region12: #{tpu_custom_call.1} parent=1 // pred_region
      _
    $region13: #{tpu_custom_call.1} parent=1 // pred_fallthru
      _
    // Predicated region
    $region14: #{tpu_custom_call.1} parent=1 // pred_check
      _
    $region15: #{tpu_custom_call.1} parent=1 // pred_check_branch
      %41 = sbr.rel (0) target = $region17
    $region16: #{tpu_custom_call.1} parent=1 // pred_region
      %s43 = ssub.s32 1024, 1024
      %44 = vsyncadd [#allocation6], %s43
      %s45 = sshll.u32 [#allocation7], 4
      %s46 = int_to_ptr.vmem [resolvable:$true] %s45
      %51 = dma.hbm_to_vmem [thread:$0]  %s3, 1024, %s46, [#allocation6], 64, 64, 4
    $region17: #{tpu_custom_call.1} parent=1 // pred_fallthru
      _
    // Predicated region
    $region18: #{tpu_custom_call.1} parent=1 // pred_check
      _
    $region19: #{tpu_custom_call.1} parent=1 // pred_check_branch
      %53 = sbr.rel (0) target = $region21
    $region20: #{tpu_custom_call.1} parent=1 // pred_region
      _
    $region21: #{tpu_custom_call.1} parent=1 // pred_fallthru
      _
    // Predicated region
    $region22: #{tpu_custom_call.1} parent=1 // pred_check
      _
    $region23: #{tpu_custom_call.1} parent=1 // pred_check_branch
      %55 = sbr.rel (0) target = $region25
    $region24: #{tpu_custom_call.1} parent=1 // pred_region
      %56 = dma.done [#allocation3], 128
    $region25: #{tpu_custom_call.1} parent=1 // pred_fallthru
      _
    // Predicated region
    $region26: #{tpu_custom_call.1} parent=1 // pred_check
      _
    $region27: #{tpu_custom_call.1} parent=1 // pred_check_branch
      %58 = sbr.rel (0) target = $region29
    $region28: #{tpu_custom_call.1} parent=1 // pred_region
      %59 = dma.done [#allocation6], 8192
    $region29: #{tpu_custom_call.1} parent=1 // pred_fallthru
      _
    // Predicated region
    $region30: #{tpu_custom_call.1} parent=1 // pred_check
      _
    $region31: #{tpu_custom_call.1} parent=1 // pred_check_branch
      %61 = sbr.rel (0) target = $region33
    $region32: #{tpu_custom_call.1} parent=1 // pred_region
      %62 = dma.done [#allocation6], 1024
    $region33: #{tpu_custom_call.1} parent=1 // pred_fallthru
      _
    %v64 = vld [vmem:[#allocation2] sm:$0xff]
    %v65 = vld [vmem:[#allocation5] sm:$0xf]
    %v66 = vld [vmem:[#allocation5 + $0x4] sm:$0xf]
    %v67 = vld [vmem:[#allocation5 + $0x8] sm:$0xf]
    %v68 = vld [vmem:[#allocation5 + $0xc] sm:$0xf]
    %v69 = vld [vmem:[#allocation5 + $0x10] sm:$0xf]
    %v70 = vld [vmem:[#allocation5 + $0x14] sm:$0xf]
    %v71 = vld [vmem:[#allocation5 + $0x18] sm:$0xf]
    %v72 = vld [vmem:[#allocation5 + $0x1c] sm:$0xf]
    %v73 = vld [vmem:[#allocation5 + $0x20] sm:$0xf]
    %v74 = vld [vmem:[#allocation5 + $0x24] sm:$0xf]
    %v75 = vld [vmem:[#allocation5 + $0x28] sm:$0xf]
    %v76 = vld [vmem:[#allocation5 + $0x2c] sm:$0xf]
    %v77 = vld [vmem:[#allocation5 + $0x30] sm:$0xf]
    %v78 = vld [vmem:[#allocation5 + $0x34] sm:$0xf]
    %v79 = vld [vmem:[#allocation5 + $0x38] sm:$0xf]
    %v80 = vld [vmem:[#allocation5 + $0x3c] sm:$0xf]
    %v81 = vld [vmem:[#allocation5 + $0x40] sm:$0xf]
    %v82 = vld [vmem:[#allocation5 + $0x44] sm:$0xf]
    %v83 = vld [vmem:[#allocation5 + $0x48] sm:$0xf]
    %v84 = vld [vmem:[#allocation5 + $0x4c] sm:$0xf]
    %v85 = vld [vmem:[#allocation5 + $0x50] sm:$0xf]
    %v86 = vld [vmem:[#allocation5 + $0x54] sm:$0xf]
    %v87 = vld [vmem:[#allocation5 + $0x58] sm:$0xf]
    %v88 = vld [vmem:[#allocation5 + $0x5c] sm:$0xf]
    %v89 = vld [vmem:[#allocation5 + $0x60] sm:$0xf]
    %v90 = vld [vmem:[#allocation5 + $0x64] sm:$0xf]
    %v91 = vld [vmem:[#allocation5 + $0x68] sm:$0xf]
    %v92 = vld [vmem:[#allocation5 + $0x6c] sm:$0xf]
    %v93 = vld [vmem:[#allocation5 + $0x70] sm:$0xf]
    %v94 = vld [vmem:[#allocation5 + $0x74] sm:$0xf]
    %v95 = vld [vmem:[#allocation5 + $0x78] sm:$0xf]
    %v96 = vld [vmem:[#allocation5 + $0x7c] sm:$0xf]
    %v97 = vld [vmem:[#allocation5 + $0x80] sm:$0xf]
    %v98 = vld [vmem:[#allocation5 + $0x84] sm:$0xf]
    %v99 = vld [vmem:[#allocation5 + $0x88] sm:$0xf]
    %v100 = vld [vmem:[#allocation5 + $0x8c] sm:$0xf]
    %v101 = vld [vmem:[#allocation5 + $0x90] sm:$0xf]
    %v102 = vld [vmem:[#allocation5 + $0x94] sm:$0xf]
    %v103 = vld [vmem:[#allocation5 + $0x98] sm:$0xf]
    %v104 = vld [vmem:[#allocation5 + $0x9c] sm:$0xf]
    %v105 = vld [vmem:[#allocation5 + $0xa0] sm:$0xf]
    %v106 = vld [vmem:[#allocation5 + $0xa4] sm:$0xf]
    %v107 = vld [vmem:[#allocation5 + $0xa8] sm:$0xf]
    %v108 = vld [vmem:[#allocation5 + $0xac] sm:$0xf]
    %v109 = vld [vmem:[#allocation5 + $0xb0] sm:$0xf]
    %v110 = vld [vmem:[#allocation5 + $0xb4] sm:$0xf]
    %v111 = vld [vmem:[#allocation5 + $0xb8] sm:$0xf]
    %v112 = vld [vmem:[#allocation5 + $0xbc] sm:$0xf]
    %v113 = vld [vmem:[#allocation5 + $0xc0] sm:$0xf]
    %v114 = vld [vmem:[#allocation5 + $0xc4] sm:$0xf]
    %v115 = vld [vmem:[#allocation5 + $0xc8] sm:$0xf]
    %v116 = vld [vmem:[#allocation5 + $0xcc] sm:$0xf]
    %v117 = vld [vmem:[#allocation5 + $0xd0] sm:$0xf]
    %v118 = vld [vmem:[#allocation5 + $0xd4] sm:$0xf]
    %v119 = vld [vmem:[#allocation5 + $0xd8] sm:$0xf]
    %v120 = vld [vmem:[#allocation5 + $0xdc] sm:$0xf]
    %v121 = vld [vmem:[#allocation5 + $0xe0] sm:$0xf]
    %v122 = vld [vmem:[#allocation5 + $0xe4] sm:$0xf]
    %v123 = vld [vmem:[#allocation5 + $0xe8] sm:$0xf]
    %v124 = vld [vmem:[#allocation5 + $0xec] sm:$0xf]
    %v125 = vld [vmem:[#allocation5 + $0xf0] sm:$0xf]
    %v126 = vld [vmem:[#allocation5 + $0xf4] sm:$0xf]
    %v127 = vld [vmem:[#allocation5 + $0xf8] sm:$0xf]
    %v128 = vld [vmem:[#allocation5 + $0xfc] sm:$0xf]
    %v129 = vld [vmem:[#allocation5 + $0x100] sm:$0xf]
    %v130 = vld [vmem:[#allocation5 + $0x104] sm:$0xf]
    %v131 = vld [vmem:[#allocation5 + $0x108] sm:$0xf]
    %v132 = vld [vmem:[#allocation5 + $0x10c] sm:$0xf]
    %v133 = vld [vmem:[#allocation5 + $0x110] sm:$0xf]
    %v134 = vld [vmem:[#allocation5 + $0x114] sm:$0xf]
    %v135 = vld [vmem:[#allocation5 + $0x118] sm:$0xf]
    %v136 = vld [vmem:[#allocation5 + $0x11c] sm:$0xf]
    %v137 = vld [vmem:[#allocation5 + $0x120] sm:$0xf]
    %v138 = vld [vmem:[#allocation5 + $0x124] sm:$0xf]
    %v139 = vld [vmem:[#allocation5 + $0x128] sm:$0xf]
    %v140 = vld [vmem:[#allocation5 + $0x12c] sm:$0xf]
    %v141 = vld [vmem:[#allocation5 + $0x130] sm:$0xf]
    %v142 = vld [vmem:[#allocation5 + $0x134] sm:$0xf]
    %v143 = vld [vmem:[#allocation5 + $0x138] sm:$0xf]
    %v144 = vld [vmem:[#allocation5 + $0x13c] sm:$0xf]
    %v145 = vld [vmem:[#allocation5 + $0x140] sm:$0xf]
    %v146 = vld [vmem:[#allocation5 + $0x144] sm:$0xf]
    %v147 = vld [vmem:[#allocation5 + $0x148] sm:$0xf]
    %v148 = vld [vmem:[#allocation5 + $0x14c] sm:$0xf]
    %v149 = vld [vmem:[#allocation5 + $0x150] sm:$0xf]
    %v150 = vld [vmem:[#allocation5 + $0x154] sm:$0xf]
    %v151 = vld [vmem:[#allocation5 + $0x158] sm:$0xf]
    %v152 = vld [vmem:[#allocation5 + $0x15c] sm:$0xf]
    %v153 = vld [vmem:[#allocation5 + $0x160] sm:$0xf]
    %v154 = vld [vmem:[#allocation5 + $0x164] sm:$0xf]
    %v155 = vld [vmem:[#allocation5 + $0x168] sm:$0xf]
    %v156 = vld [vmem:[#allocation5 + $0x16c] sm:$0xf]
    %v157 = vld [vmem:[#allocation5 + $0x170] sm:$0xf]
    %v158 = vld [vmem:[#allocation5 + $0x174] sm:$0xf]
    %v159 = vld [vmem:[#allocation5 + $0x178] sm:$0xf]
    %v160 = vld [vmem:[#allocation5 + $0x17c] sm:$0xf]
    %v161 = vld [vmem:[#allocation5 + $0x180] sm:$0xf]
    %v162 = vld [vmem:[#allocation5 + $0x184] sm:$0xf]
    %v163 = vld [vmem:[#allocation5 + $0x188] sm:$0xf]
    %v164 = vld [vmem:[#allocation5 + $0x18c] sm:$0xf]
    %v165 = vld [vmem:[#allocation5 + $0x190] sm:$0xf]
    %v166 = vld [vmem:[#allocation5 + $0x194] sm:$0xf]
    %v167 = vld [vmem:[#allocation5 + $0x198] sm:$0xf]
    %v168 = vld [vmem:[#allocation5 + $0x19c] sm:$0xf]
    %v169 = vld [vmem:[#allocation5 + $0x1a0] sm:$0xf]
    %v170 = vld [vmem:[#allocation5 + $0x1a4] sm:$0xf]
    %v171 = vld [vmem:[#allocation5 + $0x1a8] sm:$0xf]
    %v172 = vld [vmem:[#allocation5 + $0x1ac] sm:$0xf]
    %v173 = vld [vmem:[#allocation5 + $0x1b0] sm:$0xf]
    %v174 = vld [vmem:[#allocation5 + $0x1b4] sm:$0xf]
    %v175 = vld [vmem:[#allocation5 + $0x1b8] sm:$0xf]
    %v176 = vld [vmem:[#allocation5 + $0x1bc] sm:$0xf]
    %v177 = vld [vmem:[#allocation5 + $0x1c0] sm:$0xf]
    %v178 = vld [vmem:[#allocation5 + $0x1c4] sm:$0xf]
    %v179 = vld [vmem:[#allocation5 + $0x1c8] sm:$0xf]
    %v180 = vld [vmem:[#allocation5 + $0x1cc] sm:$0xf]
    %v181 = vld [vmem:[#allocation5 + $0x1d0] sm:$0xf]
    %v182 = vld [vmem:[#allocation5 + $0x1d4] sm:$0xf]
    %v183 = vld [vmem:[#allocation5 + $0x1d8] sm:$0xf]
    %v184 = vld [vmem:[#allocation5 + $0x1dc] sm:$0xf]
    %v185 = vld [vmem:[#allocation5 + $0x1e0] sm:$0xf]
    %v186 = vld [vmem:[#allocation5 + $0x1e4] sm:$0xf]
    %v187 = vld [vmem:[#allocation5 + $0x1e8] sm:$0xf]
    %v188 = vld [vmem:[#allocation5 + $0x1ec] sm:$0xf]
    %v189 = vld [vmem:[#allocation5 + $0x1f0] sm:$0xf]
    %v190 = vld [vmem:[#allocation5 + $0x1f4] sm:$0xf]
    %v191 = vld [vmem:[#allocation5 + $0x1f8] sm:$0xf]
    %v192 = vld [vmem:[#allocation5 + $0x1fc] sm:$0xf]
    %v193 = vld [vmem:[%s2] sm:$0x1]
    %v195 = vlaneseq
    %v196 = vshrl.u32 %v195, 7
    %v197 = vsub.s32 0, %v196
    %v198 = vrot.slane %v193, %v197
    %v201 = vcombine.high %v64, %v64
    %v203 = vunpack.c.l.s4 1966171168
    %v204 = vunpack.c.0.s8 %v203
    %v205 = vlaneseq
    %v206 = vshrl.u32 %v205, 7
    %v207 = vsub.s32 %v204, %v206
    %v208 = vrot.slane %v64, %v207
    %v210 = vunpack.c.l.s4 1966171168
    %v211 = vunpack.c.0.s8 %v210
    %v212 = vlaneseq
    %v213 = vshrl.u32 %v212, 7
    %v214 = vsub.s32 %v211, %v213
    %v215 = vrot.slane %v201, %v214
    %v216 = vcombine.high %v208, %v208
    %v217 = vcombine.high %v215, %v215
    %v219 = vunpack.c.l.s4 1966171168
    %v220 = vunpack.c.0.s8 %v219
    %v221 = vlaneseq
    %v222 = vshrl.u32 %v221, 7
    %v223 = vsub.s32 %v220, %v222
    %v224 = vrot.slane %v208, %v223
    %v226 = vunpack.c.l.s4 1966171168
    %v227 = vunpack.c.0.s8 %v226
    %v228 = vlaneseq
    %v229 = vshrl.u32 %v228, 7
    %v230 = vsub.s32 %v227, %v229
    %v231 = vrot.slane %v215, %v230
    %v233 = vunpack.c.l.s4 1966171168
    %v234 = vunpack.c.0.s8 %v233
    %v235 = vlaneseq
    %v236 = vshrl.u32 %v235, 7
    %v237 = vsub.s32 %v234, %v236
    %v238 = vrot.slane %v216, %v237
    %v240 = vunpack.c.l.s4 1966171168
    %v241 = vunpack.c.0.s8 %v240
    %v242 = vlaneseq
    %v243 = vshrl.u32 %v242, 7
    %v244 = vsub.s32 %v241, %v243
    %v245 = vrot.slane %v217, %v244
    %v246 = vcombine.high %v224, %v224
    %v247 = vcombine.high %v231, %v231
    %v248 = vcombine.high %v238, %v238
    %v249 = vcombine.high %v245, %v245
    %v386 = vunpack.c.l.b16 %v65
    %v387 = vunpack.c.l.b16 %v66
    %v388 = vunpack.c.l.b16 %v67
    %v389 = vunpack.c.l.b16 %v68
    %v390 = vunpack.c.l.b16 %v69
    %v391 = vunpack.c.l.b16 %v70
    %v392 = vunpack.c.l.b16 %v71
    %v393 = vunpack.c.l.b16 %v72
    %v394 = vunpack.c.l.b16 %v73
    %v395 = vunpack.c.l.b16 %v74
    %v396 = vunpack.c.l.b16 %v75
    %v397 = vunpack.c.l.b16 %v76
    %v398 = vunpack.c.l.b16 %v77
    %v399 = vunpack.c.l.b16 %v78
    %v400 = vunpack.c.l.b16 %v79
    %v401 = vunpack.c.l.b16 %v80
    %v402 = vunpack.c.l.b16 %v81
    %v403 = vunpack.c.l.b16 %v82
    %v404 = vunpack.c.l.b16 %v83
    %v405 = vunpack.c.l.b16 %v84
    %v406 = vunpack.c.l.b16 %v85
    %v407 = vunpack.c.l.b16 %v86
    %v408 = vunpack.c.l.b16 %v87
    %v409 = vunpack.c.l.b16 %v88
    %v410 = vunpack.c.l.b16 %v89
    %v411 = vunpack.c.l.b16 %v90
    %v412 = vunpack.c.l.b16 %v91
    %v413 = vunpack.c.l.b16 %v92
    %v414 = vunpack.c.l.b16 %v93
    %v415 = vunpack.c.l.b16 %v94
    %v416 = vunpack.c.l.b16 %v95
    %v417 = vunpack.c.l.b16 %v96
    %v418 = vunpack.c.l.b16 %v97
    %v419 = vunpack.c.l.b16 %v98
    %v420 = vunpack.c.l.b16 %v99
    %v421 = vunpack.c.l.b16 %v100
    %v422 = vunpack.c.l.b16 %v101
    %v423 = vunpack.c.l.b16 %v102
    %v424 = vunpack.c.l.b16 %v103
    %v425 = vunpack.c.l.b16 %v104
    %v426 = vunpack.c.l.b16 %v105
    %v427 = vunpack.c.l.b16 %v106
    %v428 = vunpack.c.l.b16 %v107
    %v429 = vunpack.c.l.b16 %v108
    %v430 = vunpack.c.l.b16 %v109
    %v431 = vunpack.c.l.b16 %v110
    %v432 = vunpack.c.l.b16 %v111
    %v433 = vunpack.c.l.b16 %v112
    %v434 = vunpack.c.l.b16 %v113
    %v435 = vunpack.c.l.b16 %v114
    %v436 = vunpack.c.l.b16 %v115
    %v437 = vunpack.c.l.b16 %v116
    %v438 = vunpack.c.l.b16 %v117
    %v439 = vunpack.c.l.b16 %v118
    %v440 = vunpack.c.l.b16 %v119
    %v441 = vunpack.c.l.b16 %v120
    %v442 = vunpack.c.l.b16 %v121
    %v443 = vunpack.c.l.b16 %v122
    %v444 = vunpack.c.l.b16 %v123
    %v445 = vunpack.c.l.b16 %v124
    %v446 = vunpack.c.l.b16 %v125
    %v447 = vunpack.c.l.b16 %v126
    %v448 = vunpack.c.l.b16 %v127
    %v449 = vunpack.c.l.b16 %v128
    %v450 = vunpack.c.l.b16 %v129
    %v451 = vunpack.c.l.b16 %v130
    %v452 = vunpack.c.l.b16 %v131
    %v453 = vunpack.c.l.b16 %v132
    %v454 = vunpack.c.l.b16 %v133
    %v455 = vunpack.c.l.b16 %v134
    %v456 = vunpack.c.l.b16 %v135
    %v457 = vunpack.c.l.b16 %v136
    %v458 = vunpack.c.l.b16 %v137
    %v459 = vunpack.c.l.b16 %v138
    %v460 = vunpack.c.l.b16 %v139
    %v461 = vunpack.c.l.b16 %v140
    %v462 = vunpack.c.l.b16 %v141
    %v463 = vunpack.c.l.b16 %v142
    %v464 = vunpack.c.l.b16 %v143
    %v465 = vunpack.c.l.b16 %v144
    %v466 = vunpack.c.l.b16 %v145
    %v467 = vunpack.c.l.b16 %v146
    %v468 = vunpack.c.l.b16 %v147
    %v469 = vunpack.c.l.b16 %v148
    %v470 = vunpack.c.l.b16 %v149
    %v471 = vunpack.c.l.b16 %v150
    %v472 = vunpack.c.l.b16 %v151
    %v473 = vunpack.c.l.b16 %v152
    %v474 = vunpack.c.l.b16 %v153
    %v475 = vunpack.c.l.b16 %v154
    %v476 = vunpack.c.l.b16 %v155
    %v477 = vunpack.c.l.b16 %v156
    %v478 = vunpack.c.l.b16 %v157
    %v479 = vunpack.c.l.b16 %v158
    %v480 = vunpack.c.l.b16 %v159
    %v481 = vunpack.c.l.b16 %v160
    %v482 = vunpack.c.l.b16 %v161
    %v483 = vunpack.c.l.b16 %v162
    %v484 = vunpack.c.l.b16 %v163
    %v485 = vunpack.c.l.b16 %v164
    %v486 = vunpack.c.l.b16 %v165
    %v487 = vunpack.c.l.b16 %v166
    %v488 = vunpack.c.l.b16 %v167
    %v489 = vunpack.c.l.b16 %v168
    %v490 = vunpack.c.l.b16 %v169
    %v491 = vunpack.c.l.b16 %v170
    %v492 = vunpack.c.l.b16 %v171
    %v493 = vunpack.c.l.b16 %v172
    %v494 = vunpack.c.l.b16 %v173
    %v495 = vunpack.c.l.b16 %v174
    %v496 = vunpack.c.l.b16 %v175
    %v497 = vunpack.c.l.b16 %v176
    %v498 = vunpack.c.l.b16 %v177
    %v499 = vunpack.c.l.b16 %v178
    %v500 = vunpack.c.l.b16 %v179
    %v501 = vunpack.c.l.b16 %v180
    %v502 = vunpack.c.l.b16 %v181
    %v503 = vunpack.c.l.b16 %v182
    %v504 = vunpack.c.l.b16 %v183
    %v505 = vunpack.c.l.b16 %v184
    %v506 = vunpack.c.l.b16 %v185
    %v507 = vunpack.c.l.b16 %v186
    %v508 = vunpack.c.l.b16 %v187
    %v509 = vunpack.c.l.b16 %v188
    %v510 = vunpack.c.l.b16 %v189
    %v511 = vunpack.c.l.b16 %v190
    %v512 = vunpack.c.l.b16 %v191
    %v513 = vunpack.c.l.b16 %v192
    %v514 = vpack.c.b16 %v387, %v386
    %v515 = vpack.c.b16 %v389, %v388
    %v516 = vpack.c.b16 %v391, %v390
    %v517 = vpack.c.b16 %v393, %v392
    %v518 = vpack.c.b16 %v395, %v394
    %v519 = vpack.c.b16 %v397, %v396
    %v520 = vpack.c.b16 %v399, %v398
    %v521 = vpack.c.b16 %v401, %v400
    %v522 = vpack.c.b16 %v403, %v402
    %v523 = vpack.c.b16 %v405, %v404
    %v524 = vpack.c.b16 %v407, %v406
    %v525 = vpack.c.b16 %v409, %v408
    %v526 = vpack.c.b16 %v411, %v410
    %v527 = vpack.c.b16 %v413, %v412
    %v528 = vpack.c.b16 %v415, %v414
    %v529 = vpack.c.b16 %v417, %v416
    %v530 = vpack.c.b16 %v419, %v418
    %v531 = vpack.c.b16 %v421, %v420
    %v532 = vpack.c.b16 %v423, %v422
    %v533 = vpack.c.b16 %v425, %v424
    %v534 = vpack.c.b16 %v427, %v426
    %v535 = vpack.c.b16 %v429, %v428
    %v536 = vpack.c.b16 %v431, %v430
    %v537 = vpack.c.b16 %v433, %v432
    %v538 = vpack.c.b16 %v435, %v434
    %v539 = vpack.c.b16 %v437, %v436
    %v540 = vpack.c.b16 %v439, %v438
    %v541 = vpack.c.b16 %v441, %v440
    %v542 = vpack.c.b16 %v443, %v442
    %v543 = vpack.c.b16 %v445, %v444
    %v544 = vpack.c.b16 %v447, %v446
    %v545 = vpack.c.b16 %v449, %v448
    %v546 = vpack.c.b16 %v451, %v450
    %v547 = vpack.c.b16 %v453, %v452
    %v548 = vpack.c.b16 %v455, %v454
    %v549 = vpack.c.b16 %v457, %v456
    %v550 = vpack.c.b16 %v459, %v458
    %v551 = vpack.c.b16 %v461, %v460
    %v552 = vpack.c.b16 %v463, %v462
    %v553 = vpack.c.b16 %v465, %v464
    %v554 = vpack.c.b16 %v467, %v466
    %v555 = vpack.c.b16 %v469, %v468
    %v556 = vpack.c.b16 %v471, %v470
    %v557 = vpack.c.b16 %v473, %v472
    %v558 = vpack.c.b16 %v475, %v474
    %v559 = vpack.c.b16 %v477, %v476
    %v560 = vpack.c.b16 %v479, %v478
    %v561 = vpack.c.b16 %v481, %v480
    %v562 = vpack.c.b16 %v483, %v482
    %v563 = vpack.c.b16 %v485, %v484
    %v564 = vpack.c.b16 %v487, %v486
    %v565 = vpack.c.b16 %v489, %v488
    %v566 = vpack.c.b16 %v491, %v490
    %v567 = vpack.c.b16 %v493, %v492
    %v568 = vpack.c.b16 %v495, %v494
    %v569 = vpack.c.b16 %v497, %v496
    %v570 = vpack.c.b16 %v499, %v498
    %v571 = vpack.c.b16 %v501, %v500
    %v572 = vpack.c.b16 %v503, %v502
    %v573 = vpack.c.b16 %v505, %v504
    %v574 = vpack.c.b16 %v507, %v506
    %v575 = vpack.c.b16 %v509, %v508
    %v576 = vpack.c.b16 %v511, %v510
    %v577 = vpack.c.b16 %v513, %v512
    %642 = vmatprep.subr.bf16.mxu0 0
    %643 = vmatpush1.bf16.msra.mxu0 %v514
    %644 = vmatprep.subr.bf16.mxu0 0
    %645 = vmatpush1.bf16.msra.mxu0 %v515
    %646 = vmatprep.subr.bf16.mxu0 0
    %647 = vmatpush1.bf16.msra.mxu0 %v516
    %648 = vmatprep.subr.bf16.mxu0 0
    %649 = vmatpush1.bf16.msra.mxu0 %v517
    %650 = vmatprep.subr.bf16.mxu0 0
    %651 = vmatpush1.bf16.msra.mxu0 %v518
    %652 = vmatprep.subr.bf16.mxu0 0
    %653 = vmatpush1.bf16.msra.mxu0 %v519
    %654 = vmatprep.subr.bf16.mxu0 0
    %655 = vmatpush1.bf16.msra.mxu0 %v520
    %656 = vmatprep.subr.bf16.mxu0 0
    %657 = vmatpush1.bf16.msra.mxu0 %v521
    %658 = vmatprep.subr.bf16.mxu0 0
    %659 = vmatpush1.bf16.msra.mxu0 %v522
    %660 = vmatprep.subr.bf16.mxu0 0
    %661 = vmatpush1.bf16.msra.mxu0 %v523
    %662 = vmatprep.subr.bf16.mxu0 0
    %663 = vmatpush1.bf16.msra.mxu0 %v524
    %664 = vmatprep.subr.bf16.mxu0 0
    %665 = vmatpush1.bf16.msra.mxu0 %v525
    %666 = vmatprep.subr.bf16.mxu0 0
    %667 = vmatpush1.bf16.msra.mxu0 %v526
    %668 = vmatprep.subr.bf16.mxu0 0
    %669 = vmatpush1.bf16.msra.mxu0 %v527
    %670 = vmatprep.subr.bf16.mxu0 0
    %671 = vmatpush1.bf16.msra.mxu0 %v528
    %672 = vmatprep.subr.bf16.mxu0 0
    %673 = vmatpush1.bf16.msra.mxu0 %v529
    %674 = vmatprep.mubr.bf16.mxu0 %v238
    %675 = vmatmul.mubr.bf16.gmra.mrb[0].mxu0 %v224
    %v676 = vpop.f32.mrb[0].mxu0
    %v677 = vadd.f32 %v198, %v676
    %v678 = vpop.f32.mrb[0].mxu0
    %v679 = vpop.f32.mrb[0].mxu0
    %v680 = vpop.f32.mrb[0].mxu0
    %681 = vdwg.mxu0
    %682 = vmatprep.subr.bf16.mxu0 0
    %683 = vmatpush1.bf16.msra.mxu0 %v530
    %684 = vmatprep.subr.bf16.mxu0 0
    %685 = vmatpush1.bf16.msra.mxu0 %v531
    %686 = vmatprep.subr.bf16.mxu0 0
    %687 = vmatpush1.bf16.msra.mxu0 %v532
    %688 = vmatprep.subr.bf16.mxu0 0
    %689 = vmatpush1.bf16.msra.mxu0 %v533
    %690 = vmatprep.subr.bf16.mxu0 0
    %691 = vmatpush1.bf16.msra.mxu0 %v534
    %692 = vmatprep.subr.bf16.mxu0 0
    %693 = vmatpush1.bf16.msra.mxu0 %v535
    %694 = vmatprep.subr.bf16.mxu0 0
    %695 = vmatpush1.bf16.msra.mxu0 %v536
    %696 = vmatprep.subr.bf16.mxu0 0
    %697 = vmatpush1.bf16.msra.mxu0 %v537
    %698 = vmatprep.subr.bf16.mxu0 0
    %699 = vmatpush1.bf16.msra.mxu0 %v538
    %700 = vmatprep.subr.bf16.mxu0 0
    %701 = vmatpush1.bf16.msra.mxu0 %v539
    %702 = vmatprep.subr.bf16.mxu0 0
    %703 = vmatpush1.bf16.msra.mxu0 %v540
    %704 = vmatprep.subr.bf16.mxu0 0
    %705 = vmatpush1.bf16.msra.mxu0 %v541
    %706 = vmatprep.subr.bf16.mxu0 0
    %707 = vmatpush1.bf16.msra.mxu0 %v542
    %708 = vmatprep.subr.bf16.mxu0 0
    %709 = vmatpush1.bf16.msra.mxu0 %v543
    %710 = vmatprep.subr.bf16.mxu0 0
    %711 = vmatpush1.bf16.msra.mxu0 %v544
    %712 = vmatprep.subr.bf16.mxu0 0
    %713 = vmatpush1.bf16.msra.mxu0 %v545
    %714 = vmatprep.mubr.bf16.mxu0 %v248
    %715 = vmatmul.mubr.bf16.gmra.mrb[0].mxu0 %v246
    %v716 = vpop.f32.mrb[0].mxu0
    %v717 = vadd.f32 %v677, %v716
    %v718 = vpop.f32.mrb[0].mxu0
    %v719 = vpop.f32.mrb[0].mxu0
    %v720 = vpop.f32.mrb[0].mxu0
    %721 = vdwg.mxu0
    %722 = vmatprep.subr.bf16.mxu0 0
    %723 = vmatpush1.bf16.msra.mxu0 %v546
    %724 = vmatprep.subr.bf16.mxu0 0
    %725 = vmatpush1.bf16.msra.mxu0 %v547
    %726 = vmatprep.subr.bf16.mxu0 0
    %727 = vmatpush1.bf16.msra.mxu0 %v548
    %728 = vmatprep.subr.bf16.mxu0 0
    %729 = vmatpush1.bf16.msra.mxu0 %v549
    %730 = vmatprep.subr.bf16.mxu0 0
    %731 = vmatpush1.bf16.msra.mxu0 %v550
    %732 = vmatprep.subr.bf16.mxu0 0
    %733 = vmatpush1.bf16.msra.mxu0 %v551
    %734 = vmatprep.subr.bf16.mxu0 0
    %735 = vmatpush1.bf16.msra.mxu0 %v552
    %736 = vmatprep.subr.bf16.mxu0 0
    %737 = vmatpush1.bf16.msra.mxu0 %v553
    %738 = vmatprep.subr.bf16.mxu0 0
    %739 = vmatpush1.bf16.msra.mxu0 %v554
    %740 = vmatprep.subr.bf16.mxu0 0
    %741 = vmatpush1.bf16.msra.mxu0 %v555
    %742 = vmatprep.subr.bf16.mxu0 0
    %743 = vmatpush1.bf16.msra.mxu0 %v556
    %744 = vmatprep.subr.bf16.mxu0 0
    %745 = vmatpush1.bf16.msra.mxu0 %v557
    %746 = vmatprep.subr.bf16.mxu0 0
    %747 = vmatpush1.bf16.msra.mxu0 %v558
    %748 = vmatprep.subr.bf16.mxu0 0
    %749 = vmatpush1.bf16.msra.mxu0 %v559
    %750 = vmatprep.subr.bf16.mxu0 0
    %751 = vmatpush1.bf16.msra.mxu0 %v560
    %752 = vmatprep.subr.bf16.mxu0 0
    %753 = vmatpush1.bf16.msra.mxu0 %v561
    %754 = vmatprep.mubr.bf16.mxu0 %v245
    %755 = vmatmul.mubr.bf16.gmra.mrb[0].mxu0 %v231
    %v756 = vpop.f32.mrb[0].mxu0
    %v757 = vadd.f32 %v717, %v756
    %v758 = vpop.f32.mrb[0].mxu0
    %v759 = vpop.f32.mrb[0].mxu0
    %v760 = vpop.f32.mrb[0].mxu0
    %761 = vdwg.mxu0
    %762 = vmatprep.subr.bf16.mxu0 0
    %763 = vmatpush1.bf16.msra.mxu0 %v562
    %764 = vmatprep.subr.bf16.mxu0 0
    %765 = vmatpush1.bf16.msra.mxu0 %v563
    %766 = vmatprep.subr.bf16.mxu0 0
    %767 = vmatpush1.bf16.msra.mxu0 %v564
    %768 = vmatprep.subr.bf16.mxu0 0
    %769 = vmatpush1.bf16.msra.mxu0 %v565
    %770 = vmatprep.subr.bf16.mxu0 0
    %771 = vmatpush1.bf16.msra.mxu0 %v566
    %772 = vmatprep.subr.bf16.mxu0 0
    %773 = vmatpush1.bf16.msra.mxu0 %v567
    %774 = vmatprep.subr.bf16.mxu0 0
    %775 = vmatpush1.bf16.msra.mxu0 %v568
    %776 = vmatprep.subr.bf16.mxu0 0
    %777 = vmatpush1.bf16.msra.mxu0 %v569
    %778 = vmatprep.subr.bf16.mxu0 0
    %779 = vmatpush1.bf16.msra.mxu0 %v570
    %780 = vmatprep.subr.bf16.mxu0 0
    %781 = vmatpush1.bf16.msra.mxu0 %v571
    %782 = vmatprep.subr.bf16.mxu0 0
    %783 = vmatpush1.bf16.msra.mxu0 %v572
    %784 = vmatprep.subr.bf16.mxu0 0
    %785 = vmatpush1.bf16.msra.mxu0 %v573
    %786 = vmatprep.subr.bf16.mxu0 0
    %787 = vmatpush1.bf16.msra.mxu0 %v574
    %788 = vmatprep.subr.bf16.mxu0 0
    %789 = vmatpush1.bf16.msra.mxu0 %v575
    %790 = vmatprep.subr.bf16.mxu0 0
    %791 = vmatpush1.bf16.msra.mxu0 %v576
    %792 = vmatprep.subr.bf16.mxu0 0
    %793 = vmatpush1.bf16.msra.mxu0 %v577
    %794 = vmatprep.mubr.bf16.mxu0 %v249
    %795 = vmatmul.mubr.bf16.gmra.mrb[0].mxu0 %v247
    %v796 = vpop.f32.mrb[0].mxu0
    %v797 = vadd.f32 %v757, %v796
    %v798 = vpop.f32.mrb[0].mxu0
    %v799 = vpop.f32.mrb[0].mxu0
    %v800 = vpop.f32.mrb[0].mxu0
    %801 = vdwg.mxu0
    %v802 = vmax.f32 %v797, 0.0
    %803 = vst [vmem:[#allocation8] sm:$0x3] %v802
    %v804 = vpack.c.bf16 %v802, %v802
    %v805 = vld [vmem:[#allocation7] sm:$0xf]
    %v806 = vld [vmem:[#allocation7 + $0x4] sm:$0xf]
    %v807 = vld [vmem:[#allocation7 + $0x8] sm:$0xf]
    %v808 = vld [vmem:[#allocation7 + $0xc] sm:$0xf]
    %v809 = vld [vmem:[#allocation7 + $0x10] sm:$0xf]
    %v810 = vld [vmem:[#allocation7 + $0x14] sm:$0xf]
    %v811 = vld [vmem:[#allocation7 + $0x18] sm:$0xf]
    %v812 = vld [vmem:[#allocation7 + $0x1c] sm:$0xf]
    %v813 = vld [vmem:[#allocation7 + $0x20] sm:$0xf]
    %v814 = vld [vmem:[#allocation7 + $0x24] sm:$0xf]
    %v815 = vld [vmem:[#allocation7 + $0x28] sm:$0xf]
    %v816 = vld [vmem:[#allocation7 + $0x2c] sm:$0xf]
    %v817 = vld [vmem:[#allocation7 + $0x30] sm:$0xf]
    %v818 = vld [vmem:[#allocation7 + $0x34] sm:$0xf]
    %v819 = vld [vmem:[#allocation7 + $0x38] sm:$0xf]
    %v820 = vld [vmem:[#allocation7 + $0x3c] sm:$0xf]
    %v821 = vld [vmem:[%s4] sm:$0x1]
    %v823 = vlaneseq
    %v824 = vshrl.u32 %v823, 7
    %v825 = vsub.s32 0, %v824
    %v826 = vrot.slane %v821, %v825
    %v844 = vunpack.c.l.b16 %v805
    %v845 = vunpack.c.l.b16 %v806
    %v846 = vunpack.c.l.b16 %v807
    %v847 = vunpack.c.l.b16 %v808
    %v848 = vunpack.c.l.b16 %v809
    %v849 = vunpack.c.l.b16 %v810
    %v850 = vunpack.c.l.b16 %v811
    %v851 = vunpack.c.l.b16 %v812
    %v852 = vunpack.c.l.b16 %v813
    %v853 = vunpack.c.l.b16 %v814
    %v854 = vunpack.c.l.b16 %v815
    %v855 = vunpack.c.l.b16 %v816
    %v856 = vunpack.c.l.b16 %v817
    %v857 = vunpack.c.l.b16 %v818
    %v858 = vunpack.c.l.b16 %v819
    %v859 = vunpack.c.l.b16 %v820
    %v860 = vpack.c.b16 %v845, %v844
    %v861 = vpack.c.b16 %v847, %v846
    %v862 = vpack.c.b16 %v849, %v848
    %v863 = vpack.c.b16 %v851, %v850
    %v864 = vpack.c.b16 %v853, %v852
    %v865 = vpack.c.b16 %v855, %v854
    %v866 = vpack.c.b16 %v857, %v856
    %v867 = vpack.c.b16 %v859, %v858
    %876 = vmatprep.subr.bf16.mxu0 0
    %877 = vmatpush1.bf16.msra.mxu0 %v860
    %878 = vmatprep.subr.bf16.mxu0 0
    %879 = vmatpush1.bf16.msra.mxu0 %v861
    %880 = vmatprep.subr.bf16.mxu0 0
    %881 = vmatpush1.bf16.msra.mxu0 %v862
    %882 = vmatprep.subr.bf16.mxu0 0
    %883 = vmatpush1.bf16.msra.mxu0 %v863
    %884 = vmatprep.subr.bf16.mxu0 0
    %885 = vmatpush1.bf16.msra.mxu0 %v864
    %886 = vmatprep.subr.bf16.mxu0 0
    %887 = vmatpush1.bf16.msra.mxu0 %v865
    %888 = vmatprep.subr.bf16.mxu0 0
    %889 = vmatpush1.bf16.msra.mxu0 %v866
    %890 = vmatprep.subr.bf16.mxu0 0
    %891 = vmatpush1.bf16.msra.mxu0 %v867
    %892 = vmatprep.subr.bf16.mxu0 0
    %893 = vmatpush1.bf16.msra.mxu0 0
    %894 = vmatprep.subr.bf16.mxu0 0
    %895 = vmatpush1.bf16.msra.mxu0 0
    %896 = vmatprep.subr.bf16.mxu0 0
    %897 = vmatpush1.bf16.msra.mxu0 0
    %898 = vmatprep.subr.bf16.mxu0 0
    %899 = vmatpush1.bf16.msra.mxu0 0
    %900 = vmatprep.subr.bf16.mxu0 0
    %901 = vmatpush1.bf16.msra.mxu0 0
    %902 = vmatprep.subr.bf16.mxu0 0
    %903 = vmatpush1.bf16.msra.mxu0 0
    %904 = vmatprep.subr.bf16.mxu0 0
    %905 = vmatpush1.bf16.msra.mxu0 0
    %906 = vmatprep.subr.bf16.mxu0 0
    %907 = vmatpush1.bf16.msra.mxu0 0
    %908 = vmatprep.mubr.bf16.mxu0 0
    %909 = vmatmul.mubr.bf16.gmra.mrb[0].mxu0 %v804
    %v910 = vpop.f32.mrb[0].mxu0
    %v911 = vadd.f32 %v826, %v910
    %v912 = vpop.f32.mrb[0].mxu0
    %v913 = vpop.f32.mrb[0].mxu0
    %v914 = vpop.f32.mrb[0].mxu0
    %915 = vdwg.mxu0
    %916 = vst [vmem:[#allocation9] sm:$0x3] %v911
    // Predicated region
    $region34: #{tpu_custom_call.1} parent=1 // pred_check
      _
    $region35: #{tpu_custom_call.1} parent=1 // pred_check_branch
      %918 = sbr.rel (0) target = $region37
    $region36: #{tpu_custom_call.1} parent=1 // pred_region
      %s920 = ssub.s32 32, 32
      %921 = vsyncadd [#allocation4], %s920
      %s923 = sshll.u32 [#allocation8], 4
      %s924 = int_to_ptr.vmem [resolvable:$true] %s923
      %926 = dma.vmem_to_hbm [thread:$0]  %s924, 32, %s5, [#allocation4]
    $region37: #{tpu_custom_call.1} parent=1 // pred_fallthru
      _
    // Predicated region
    $region38: #{tpu_custom_call.1} parent=1 // pred_check
      _
    $region39: #{tpu_custom_call.1} parent=1 // pred_check_branch
      %928 = sbr.rel (0) target = $region41
    $region40: #{tpu_custom_call.1} parent=1 // pred_region
      %s930 = ssub.s32 32, 32
      %931 = vsyncadd [#allocation10], %s930
      %s933 = sshll.u32 [#allocation9], 4
      %s934 = int_to_ptr.vmem [resolvable:$true] %s933
      %936 = dma.vmem_to_hbm [thread:$0]  %s934, 32, %s6, [#allocation10]
    $region41: #{tpu_custom_call.1} parent=1 // pred_fallthru
      _
    // Predicated region
    $region42: #{tpu_custom_call.1} parent=1 // pred_check
      _
    $region43: #{tpu_custom_call.1} parent=1 // pred_check_branch
      %938 = sbr.rel (0) target = $region45
    $region44: #{tpu_custom_call.1} parent=1 // pred_region
      %939 = dma.done [#allocation4], 32
    $region45: #{tpu_custom_call.1} parent=1 // pred_fallthru
      _
    // Predicated region
    $region46: #{tpu_custom_call.1} parent=1 // pred_check
      _
    $region47: #{tpu_custom_call.1} parent=1 // pred_check_branch
      %941 = sbr.rel (0) target = $region49
    $region48: #{tpu_custom_call.1} parent=1 // pred_region
      %942 = dma.done [#allocation10], 32
    $region49: #{tpu_custom_call.1} parent=1 // pred_fallthru
      _
    %943 = vsyncpa [#allocation3], 1
    %944 = vsyncpa [#allocation6], 1
    %945 = vsyncpa [#allocation4], 1
    %946 = vsyncpa [#allocation10], 1

</llo_original>
